<compile_context>
chip_gen: v6e
topology: v6e:2x2x1
jax: 0.10.0
libtpu: 0.0.40
codegen_flags: <defaults>
</compile_context>

<pallas_src>
import functools

import jax
import jax.numpy as jnp
from jax.experimental import pallas as pl
from jax.experimental.pallas import tpu as pltpu


def _round_up(x: int, m: int) -> int:
    return (x + m - 1) // m * m


def _lane_multiple() -> int:
    """Feature-dim padding granule: 256 on v6e/v7x (2x256^2 MXU), 128 on v5e-."""
    try:
        kind = jax.devices()[0].device_kind.lower()
    except Exception:
        return 256
    return 128 if any(t in kind for t in ("v2", "v3", "v4", "v5")) else 256


def _vmem_limit_bytes() -> int:
    """Scoped-VMEM budget: 75% of physical VMEM (96 MiB v5e/v6e, 48 MiB v7x)."""
    try:
        cap = pltpu.get_tpu_info().vmem_capacity_bytes
    except Exception:
        cap = 64 * 1024 * 1024
    return int(cap * 3 // 4)


def mlp_kernel(x_ref, w1_ref, b1_ref, w2_ref, b2_ref, o_ref, acc_ref):
    """One (batch-tile, hidden-chunk) grid step of relu(x@W1+b1)@W2 + b2."""
    j = pl.program_id(1)

    @pl.when(j == 0)
    def _init():
        acc_ref[...] = jnp.zeros_like(acc_ref)

    # fc1 chunk: [tm, K](bf16) @ [K, th](bf16) -> f32 accumulate on the MXU.
    xb = x_ref[...].astype(jnp.bfloat16)      # in-register cast, no HBM pass
    h = jnp.dot(xb, w1_ref[...], preferred_element_type=jnp.float32)
    # Bias + ReLU epilogue in f32 (cheap everywhere, incl. v5e w/o bf16 VPU).
    h = jnp.maximum(h + b1_ref[...], 0.0)
    # fc2 partial product over this hidden chunk, accumulated in f32 scratch.
    acc_ref[...] += jnp.dot(h.astype(jnp.bfloat16), w2_ref[...],
                            preferred_element_type=jnp.float32)

    @pl.when(j == pl.num_programs(1) - 1)
    def _finalize():
        # Lane-dense (Np is a multiple of 128/256) full-tile store.
        o_ref[...] = (acc_ref[...] + b2_ref[...]).astype(o_ref.dtype)


def prepare_mlp_params(w1, b1, w2, b2, *, th_max=1024):
    """Pad + cast parameters ONCE (hoisted out of the per-call path).

    w1: [D_in, H]   b1: [H] or [1, H]   w2: [H, D_out]   b2: [D_out] or [1, D_out]
    """
    lane = _lane_multiple()
    D_in, H = w1.shape
    D_out = w2.shape[1]

    Hp = _round_up(H, lane)
    Np = _round_up(D_out, lane)
    # Hidden-chunk size: largest lane multiple <= th_max that divides Hp
    # exactly (exact division keeps the reduction padding-free and correct).
    th = lane
    while th * 2 <= th_max and Hp % (th * 2) == 0:
        th *= 2

    b1 = jnp.asarray(b1).reshape(1, H)          # accept nn.Linear-style 1-D bias
    b2 = jnp.asarray(b2).reshape(1, D_out)

    # Zero padding is exact: padded hidden columns give relu(0 + 0) = 0 and hit
    # zero rows of W2; padded output columns are sliced away after the call.
    w1p = jnp.zeros((D_in, Hp), jnp.bfloat16).at[:, :H].set(w1.astype(jnp.bfloat16))
    b1p = jnp.zeros((1, Hp), jnp.float32).at[:, :H].set(b1.astype(jnp.float32))
    w2p = jnp.zeros((Hp, Np), jnp.bfloat16).at[:H, :D_out].set(w2.astype(jnp.bfloat16))
    b2p = jnp.zeros((1, Np), jnp.float32).at[:, :D_out].set(b2.astype(jnp.float32))
    return {"w1": w1p, "b1": b1p, "w2": w2p, "b2": b2p, "d_out": D_out, "th": th}


@functools.partial(jax.jit, static_argnames=("d_out", "th", "tm"))
def _mlp_forward_padded(x, w1p, b1p, w2p, b2p, *, d_out, th, tm):
    B, K = x.shape
    Hp = w1p.shape[1]
    Np = w2p.shape[1]
    n_h = Hp // th

    # Batch tile: never pad x.  A block equal to the full batch is always
    # legal; otherwise keep tm a 256-multiple and let Pallas mask the boundary
    # block.  Force >= 2 tiles for big batches so v7x's 2 TCs both get work.
    if B > tm:
        tm_eff = tm
    elif B >= 512:
        tm_eff = _round_up((B + 1) // 2, 256)
    else:
        tm_eff = B
    n_b = pl.cdiv(B, tm_eff)

    cost = pl.CostEstimate(
        flops=2 * B * (K * Hp + Hp * Np),
        transcendentals=0,
        bytes_accessed=int(x.size * x.dtype.itemsize
                           + n_b * (w1p.size + w2p.size) * 2
                           + (b1p.size + b2p.size) * 4
                           + B * Np * x.dtype.itemsize),
    )

    out = pl.pallas_call(
        mlp_kernel,
        out_shape=jax.ShapeDtypeStruct((B, Np), x.dtype),
        grid_spec=pl.GridSpec(
            grid=(n_b, n_h),
            in_specs=[
                # x: one batch tile, resident across the whole hidden axis.
                pl.BlockSpec((tm_eff, K), lambda i, j: (i, 0)),
                # W1 / b1: one hidden chunk per inner step.
                pl.BlockSpec((K, th), lambda i, j: (0, j)),
                pl.BlockSpec((1, th), lambda i, j: (0, j)),
                # W2: matching hidden chunk, full lane-dense output width.
                pl.BlockSpec((th, Np), lambda i, j: (j, 0)),
                # b2: constant block index -> fetched once, stays resident.
                pl.BlockSpec((1, Np), lambda i, j: (0, 0)),
            ],
            out_specs=pl.BlockSpec((tm_eff, Np), lambda i, j: (i, 0)),
            scratch_shapes=[pltpu.VMEM((tm_eff, Np), jnp.float32)],
        ),
        compiler_params=pltpu.CompilerParams(
            # Batch tiles are independent (megacore / v7x 2-TC sharding);
            # the hidden axis is the reduction -> "arbitrary", innermost.
            dimension_semantics=("parallel", "arbitrary"),
            vmem_limit_bytes=_vmem_limit_bytes(),
        ),
        cost_estimate=cost,
    )(x, w1p, b1p, w2p, b2p)

    return out[:, :d_out]


def mlp_forward(x, params, *, tm=512):
    """y = relu(x @ W1 + b1) @ W2 + b2 using pre-padded params."""
    return _mlp_forward_padded(
        x, params["w1"], params["b1"], params["w2"], params["b2"],
        d_out=params["d_out"], th=params["th"], tm=tm)


if __name__ == "__main__":
    # MLP(input_dim, output_dim, hidden_dim=32): fc1 -> relu -> fc2
    batch = 8
    input_dim = 16
    hidden_dim = 32
    output_dim = 8

    key = jax.random.PRNGKey(0)
    kx, kw1, kb1, kw2, kb2 = jax.random.split(key, 5)

    x = jax.random.normal(kx, (batch, input_dim), dtype=jnp.float32)
    # Deterministic synthetic parameters (stand-in for torch.manual_seed init);
    # weights as [in, out] (transpose of nn.Linear.weight), biases 1-D like
    # nn.Linear.bias.
    w1 = jax.random.normal(kw1, (input_dim, hidden_dim), jnp.float32) * 0.1
    b1 = jax.random.normal(kb1, (hidden_dim,), jnp.float32) * 0.1
    w2 = jax.random.normal(kw2, (hidden_dim, output_dim), jnp.float32) * 0.1
    b2 = jax.random.normal(kb2, (output_dim,), jnp.float32) * 0.1

    # Pad / cast parameters exactly once; reuse across every forward call.
    params = prepare_mlp_params(w1, b1, w2, b2)

    out = mlp_forward(x, params)
    out = jax.block_until_ready(out)

    # Reference (exact module semantics in f32). Kernel uses bf16 MXU operands
    # with f32 accumulation, so compare at bf16-appropriate tolerance.
    ref = jnp.maximum(x @ w1 + b1[None, :], 0.0) @ w2 + b2[None, :]
    assert out.shape == (batch, output_dim)
    assert out.dtype == x.dtype
    assert jnp.allclose(out, ref, atol=3e-2, rtol=3e-2), (
        float(jnp.max(jnp.abs(out - ref))))

    print("KERNEL_OK")
</pallas_src>

<mosaic_0001>
module attributes {stable_mosaic.version = 11 : i64} {
  func.func @mlp_kernel(%arg0: i32, %arg1: i32, %arg2: memref<8x16xf32, #tpu.memory_space<vmem>>, %arg3: memref<16x256xbf16, #tpu.memory_space<vmem>>, %arg4: memref<1x256xf32, #tpu.memory_space<vmem>>, %arg5: memref<256x256xbf16, #tpu.memory_space<vmem>>, %arg6: memref<1x256xf32, #tpu.memory_space<vmem>>, %arg7: memref<8x256xf32, #tpu.memory_space<vmem>>, %arg8: memref<8x256xf32, #tpu.memory_space<vmem>>) attributes {dimension_semantics = [#tpu.dimension_semantics<parallel>, #tpu.dimension_semantics<arbitrary>], iteration_bounds = array<i64: 1, 1>, scalar_prefetch = 0 : i64, scratch_operands = 1 : i64, tpu.core_type = #tpu.core_type<tc>, window_params = [{transform_indices = @transform_0, window_bounds = array<i64: 8, 16>}, {transform_indices = @transform_1, window_bounds = array<i64: 16, 256>}, {transform_indices = @transform_2, window_bounds = array<i64: 1, 256>}, {transform_indices = @transform_3, window_bounds = array<i64: 256, 256>}, {pipeline_mode = #tpu.pipeline_mode<synchronous>, transform_indices = @transform_4, window_bounds = array<i64: 1, 256>}, {transform_indices = @transform_5, window_bounds = array<i64: 8, 256>}]} {
    %c0_i32 = arith.constant 0 : i32
    %0 = arith.cmpi eq, %arg1, %c0_i32 : i32
    %1 = arith.extui %0 : i1 to i32
    %c0_i32_0 = arith.constant 0 : i32
    %2 = arith.cmpi ne, %1, %c0_i32_0 : i32
    scf.if %2 {
      %cst_16 = arith.constant 0.000000e+00 : f32
      %21 = vector.broadcast %cst_16 : f32 to vector<8x256xf32>
      %c0_17 = arith.constant 0 : index
      %c0_18 = arith.constant 0 : index
      %22 = vector.load %arg8[%c0_17, %c0_18] : memref<8x256xf32, #tpu.memory_space<vmem>>, vector<8x256xf32>
      tpu.vector_store %arg8[%c0_17, %c0_18], %21 {strides = array<i32>} : memref<8x256xf32, #tpu.memory_space<vmem>>, vector<8x256xf32>,
    } else {
    }
    %c0 = arith.constant 0 : index
    %c0_1 = arith.constant 0 : index
    %3 = vector.load %arg2[%c0, %c0_1] : memref<8x16xf32, #tpu.memory_space<vmem>>, vector<8x16xf32>
    %4 = arith.truncf %3 : vector<8x16xf32> to vector<8x16xbf16>
    %c0_2 = arith.constant 0 : index
    %c0_3 = arith.constant 0 : index
    %5 = vector.load %arg3[%c0_2, %c0_3] : memref<16x256xbf16, #tpu.memory_space<vmem>>, vector<16x256xbf16>
    %cst = arith.constant dense<0.000000e+00> : vector<8x256xf32>
    %6 = tpu.matmul %4, %5, %cst {dimension_numbers = #tpu.dot_dimension_numbers<[1], [0], [0], [1], [0, 0, 1, 1], [], []>} : vector<8x16xbf16>, vector<16x256xbf16>, vector<8x256xf32> -> vector<8x256xf32>
    %c0_4 = arith.constant 0 : index
    %c0_5 = arith.constant 0 : index
    %7 = vector.load %arg4[%c0_4, %c0_5] : memref<1x256xf32, #tpu.memory_space<vmem>>, vector<1x256xf32>
    %8 = vector.broadcast %7 : vector<1x256xf32> to vector<8x256xf32>
    %9 = arith.addf %6, %8 : vector<8x256xf32>
    %cst_6 = arith.constant 0.000000e+00 : f32
    %10 = vector.broadcast %cst_6 : f32 to vector<8x256xf32>
    %11 = arith.maximumf %9, %10 : vector<8x256xf32>
    %c0_7 = arith.constant 0 : index
    %c0_8 = arith.constant 0 : index
    %12 = vector.load %arg8[%c0_7, %c0_8] : memref<8x256xf32, #tpu.memory_space<vmem>>, vector<8x256xf32>
    %13 = arith.truncf %11 : vector<8x256xf32> to vector<8x256xbf16>
    %c0_9 = arith.constant 0 : index
    %c0_10 = arith.constant 0 : index
    %14 = vector.load %arg5[%c0_9, %c0_10] : memref<256x256xbf16, #tpu.memory_space<vmem>>, vector<256x256xbf16>
    %cst_11 = arith.constant dense<0.000000e+00> : vector<8x256xf32>
    %15 = tpu.matmul %13, %14, %cst_11 {dimension_numbers = #tpu.dot_dimension_numbers<[1], [0], [0], [1], [0, 0, 1, 1], [], []>} : vector<8x256xbf16>, vector<256x256xbf16>, vector<8x256xf32> -> vector<8x256xf32>
    %16 = arith.addf %12, %15 : vector<8x256xf32>
    %c0_12 = arith.constant 0 : index
    %c0_13 = arith.constant 0 : index
    %17 = vector.load %arg8[%c0_12, %c0_13] : memref<8x256xf32, #tpu.memory_space<vmem>>, vector<8x256xf32>
    tpu.vector_store %arg8[%c0_12, %c0_13], %16 {strides = array<i32>} : memref<8x256xf32, #tpu.memory_space<vmem>>, vector<8x256xf32>,
    %c0_i32_14 = arith.constant 0 : i32
    %18 = arith.cmpi eq, %arg1, %c0_i32_14 : i32
    %19 = arith.extui %18 : i1 to i32
    %c0_i32_15 = arith.constant 0 : i32
    %20 = arith.cmpi ne, %19, %c0_i32_15 : i32
    scf.if %20 {
      %c0_16 = arith.constant 0 : index
      %c0_17 = arith.constant 0 : index
      %21 = vector.load %arg8[%c0_16, %c0_17] : memref<8x256xf32, #tpu.memory_space<vmem>>, vector<8x256xf32>
      %c0_18 = arith.constant 0 : index
      %c0_19 = arith.constant 0 : index
      %22 = vector.load %arg6[%c0_18, %c0_19] : memref<1x256xf32, #tpu.memory_space<vmem>>, vector<1x256xf32>
      %23 = vector.broadcast %22 : vector<1x256xf32> to vector<8x256xf32>
      %24 = arith.addf %21, %23 : vector<8x256xf32>
      %c0_20 = arith.constant 0 : index
      %c0_21 = arith.constant 0 : index
      %25 = vector.load %arg7[%c0_20, %c0_21] : memref<8x256xf32, #tpu.memory_space<vmem>>, vector<8x256xf32>
      tpu.vector_store %arg7[%c0_20, %c0_21], %24 {strides = array<i32>} : memref<8x256xf32, #tpu.memory_space<vmem>>, vector<8x256xf32>,
    } else {
    }
    return
  }
  func.func @transform_0(%arg0: i32, %arg1: i32) -> (i32, i32) {
    %c0_i32 = arith.constant 0 : i32
    %c0_i32_0 = arith.constant 0 : i32
    return %arg0, %c0_i32 : i32, i32
  }
  func.func @transform_1(%arg0: i32, %arg1: i32) -> (i32, i32) {
    %c0_i32 = arith.constant 0 : i32
    %c0_i32_0 = arith.constant 0 : i32
    return %c0_i32, %arg1 : i32, i32
  }
  func.func @transform_2(%arg0: i32, %arg1: i32) -> (i32, i32) {
    %c0_i32 = arith.constant 0 : i32
    %c0_i32_0 = arith.constant 0 : i32
    return %c0_i32, %arg1 : i32, i32
  }
  func.func @transform_3(%arg0: i32, %arg1: i32) -> (i32, i32) {
    %c0_i32 = arith.constant 0 : i32
    %c0_i32_0 = arith.constant 0 : i32
    return %arg1, %c0_i32 : i32, i32
  }
  func.func @transform_4(%arg0: i32, %arg1: i32) -> (i32, i32) {
    %c0_i32 = arith.constant 0 : i32
    %c0_i32_0 = arith.constant 0 : i32
    %c0_i32_1 = arith.constant 0 : i32
    return %c0_i32, %c0_i32_0 : i32, i32
  }
  func.func @transform_5(%arg0: i32, %arg1: i32) -> (i32, i32) {
    %c0_i32 = arith.constant 0 : i32
    %c0_i32_0 = arith.constant 0 : i32
    return %arg0, %c0_i32 : i32, i32
  }
}

</mosaic_0001>

<llo_original>
// kernel: _mlp_forward_padded.1
$region0: #{_mlp_forward_padded.1}
  #allocation0 [shape = 'u32[]', space=smem, size = 0x4, offset = 0x4, fixed_abs, tag = 'smem constant byte address 0x4 - core index']
  #allocation1 [shape = 'u32[144,128]{1,0:T(1,128)}', space=vmem, size = 0x12000, scoped, tag = 'internal scratch']
  #allocation2 [shape = 'f32[8,256]{1,0:T(8,128)}', space=vmem, size = 0x2000, scoped, tag = 'scratch operand']
  %s0 = inlined_call_operand.hbm [shape: f32[8,16], index: 0, kind: input, shape index: {}]
  %s1 = inlined_call_operand.hbm [shape: bf16[16,256], index: 1, kind: input, shape index: {}]
  %s2 = inlined_call_operand.vmem [shape: f32[1,256], index: 2, kind: input, shape index: {}]
  %s3 = inlined_call_operand.hbm [shape: bf16[256,256], index: 3, kind: input, shape index: {}]
  %s4 = inlined_call_operand.vmem [shape: f32[1,256], index: 4, kind: input, shape index: {}]
  %s5 = inlined_call_operand.vmem [shape: f32[8,256], index: 5, kind: output, shape index: {}]
  %s6 = sld [smem:[#allocation0]]
  $region50: #{_mlp_forward_padded.1} parent=0
    _
  %s8 = ssub.s32 1, %s6
  %s9 = scalar_select 0, %s8, %s6
  $region1: #{_mlp_forward_padded.1} parent=0
    #allocation3 [shape = 'u8[4096]{0}', space=vmem, size = 0x1000, scoped, tag = 'input window, operand 0, single buffered']
    #allocation4 [shape = 's32[1]{0}', space=sflag, size = 0x4, scoped, tag = 'scoped memory for _mlp_forward_padded.1']
    #allocation5 [shape = 'u8[8192]{0}', space=vmem, size = 0x2000, scoped, tag = 'input window, operand 1, single buffered']
    #allocation6 [shape = 's32[1]{0}', space=sflag, size = 0x4, scoped, tag = 'scoped memory for _mlp_forward_padded.1']
    #allocation7 [shape = 'u8[131072]{0}', space=vmem, size = 0x20000, scoped, tag = 'input window, operand 3, single buffered']
    %10 = vsyncpa [#allocation4], 0
    %11 = vsyncpa [#allocation6], 0
    // Predicated region
    $region2: #{_mlp_forward_padded.1} parent=1 // pred_check
      _
    $region3: #{_mlp_forward_padded.1} parent=1 // pred_check_branch
      %13 = sbr.rel (0) target = $region5
    $region4: #{_mlp_forward_padded.1} parent=1 // pred_region
      %s15 = ssub.s32 128, 128
      %16 = vsyncadd [#allocation4], %s15
      %s18 = sshll.u32 [#allocation3], 4
      %s19 = int_to_ptr.vmem [resolvable:$true] %s18
      %21 = dma.hbm_to_vmem [thread:$0]  %s0, 128, %s19, [#allocation4]
    $region5: #{_mlp_forward_padded.1} parent=1 // pred_fallthru
      _
    // Predicated region
    $region6: #{_mlp_forward_padded.1} parent=1 // pred_check
      _
    $region7: #{_mlp_forward_padded.1} parent=1 // pred_check_branch
      %23 = sbr.rel (0) target = $region9
    $region8: #{_mlp_forward_padded.1} parent=1 // pred_region
      %s25 = ssub.s32 256, 256
      %26 = vsyncadd [#allocation6], %s25
      %s27 = sshll.u32 [#allocation5], 4
      %s28 = int_to_ptr.vmem [resolvable:$true] %s27
      %33 = dma.hbm_to_vmem [thread:$0]  %s1, 256, %s28, [#allocation6], 128, 128, 8
    $region9: #{_mlp_forward_padded.1} parent=1 // pred_fallthru
      _
    // Predicated region
    $region10: #{_mlp_forward_padded.1} parent=1 // pred_check
      _
    $region11: #{_mlp_forward_padded.1} parent=1 // pred_check_branch
      %35 = sbr.rel (0) target = $region13
    $region12: #{_mlp_forward_padded.1} parent=1 // pred_region
      _
    $region13: #{_mlp_forward_padded.1} parent=1 // pred_fallthru
      _
    // Predicated region
    $region14: #{_mlp_forward_padded.1} parent=1 // pred_check
      _
    $region15: #{_mlp_forward_padded.1} parent=1 // pred_check_branch
      %37 = sbr.rel (0) target = $region17
    $region16: #{_mlp_forward_padded.1} parent=1 // pred_region
      %s39 = ssub.s32 4096, 4096
      %40 = vsyncadd [#allocation6], %s39
      %s41 = sshll.u32 [#allocation7], 4
      %s42 = int_to_ptr.vmem [resolvable:$true] %s41
      %47 = dma.hbm_to_vmem [thread:$0]  %s3, 4096, %s42, [#allocation6], 128, 128, 8
    $region17: #{_mlp_forward_padded.1} parent=1 // pred_fallthru
      _
    // Predicated region
    $region18: #{_mlp_forward_padded.1} parent=1 // pred_check
      _
    $region19: #{_mlp_forward_padded.1} parent=1 // pred_check_branch
      %49 = sbr.rel (0) target = $region21
    $region20: #{_mlp_forward_padded.1} parent=1 // pred_region
      _
    $region21: #{_mlp_forward_padded.1} parent=1 // pred_fallthru
      _
    // Predicated region
    $region22: #{_mlp_forward_padded.1} parent=1 // pred_check
      _
    $region23: #{_mlp_forward_padded.1} parent=1 // pred_check_branch
      %51 = sbr.rel (0) target = $region25
    $region24: #{_mlp_forward_padded.1} parent=1 // pred_region
      %52 = dma.done [#allocation4], 128
    $region25: #{_mlp_forward_padded.1} parent=1 // pred_fallthru
      _
    // Predicated region
    $region26: #{_mlp_forward_padded.1} parent=1 // pred_check
      _
    $region27: #{_mlp_forward_padded.1} parent=1 // pred_check_branch
      %54 = sbr.rel (0) target = $region29
    $region28: #{_mlp_forward_padded.1} parent=1 // pred_region
      %55 = dma.done [#allocation6], 256
    $region29: #{_mlp_forward_padded.1} parent=1 // pred_fallthru
      _
    // Predicated region
    $region30: #{_mlp_forward_padded.1} parent=1 // pred_check
      _
    $region31: #{_mlp_forward_padded.1} parent=1 // pred_check_branch
      %57 = sbr.rel (0) target = $region33
    $region32: #{_mlp_forward_padded.1} parent=1 // pred_region
      %58 = dma.done [#allocation6], 4096
    $region33: #{_mlp_forward_padded.1} parent=1 // pred_fallthru
      _
    %p60 = scmp.eq.s32.totalorder 0, 0
    // Predicated region
    $region34: #{_mlp_forward_padded.1} parent=1 // pred_check
      %p61 = pneg %p60
    $region35: #{_mlp_forward_padded.1} parent=1 // pred_check_branch
      %63 = sbr.rel (%p61) target = $region37
    $region36: #{_mlp_forward_padded.1} parent=1 // pred_region
      %64 = vst [vmem:[#allocation2] sm:$0xff] 0.0
      %65 = vst [vmem:[#allocation2 + $0x8] sm:$0xff] 0.0
    $region37: #{_mlp_forward_padded.1} parent=1 // pred_fallthru
      _
    %v66 = vld [vmem:[#allocation3] sm:$0xff]
    %v67 = vpack.c.bf16 %v66, %v66
    %v68 = vld [vmem:[#allocation5] sm:$0xff]
    %v69 = vld [vmem:[#allocation5 + $0x8] sm:$0xff]
    %v70 = vld [vmem:[%s2] sm:$0x3]
    %v72 = vlaneseq
    %v73 = vshrl.u32 %v72, 7
    %v74 = vsub.s32 0, %v73
    %v75 = vrot.slane %v70, %v74
    %v76 = vlaneseq
    %v77 = vshrl.u32 %v76, 7
    %v78 = vsub.s32 1, %v77
    %v79 = vrot.slane %v70, %v78
    %v84 = vunpack.c.l.b16 %v68
    %v85 = vunpack.c.h.b16 %v68
    %v86 = vunpack.c.l.b16 %v69
    %v87 = vunpack.c.h.b16 %v69
    %v88 = vpack.c.b16 %v86, %v84
    %v89 = vpack.c.b16 %v87, %v85
    %vm92 = vcmask 130048
    %v94 = vsel %vm92, %v67, 0
    %96 = vmatprep.subr.bf16.mxu0 0
    %97 = vmatpush1.bf16.msra.mxu0 0
    %98 = vmatprep.subr.bf16.mxu0 0
    %99 = vmatpush1.bf16.msra.mxu0 0
    %100 = vmatprep.subr.bf16.mxu0 0
    %101 = vmatpush1.bf16.msra.mxu0 0
    %102 = vmatprep.subr.bf16.mxu0 0
    %103 = vmatpush1.bf16.msra.mxu0 0
    %104 = vmatprep.subr.bf16.mxu0 0
    %105 = vmatpush1.bf16.msra.mxu0 0
    %106 = vmatprep.subr.bf16.mxu0 0
    %107 = vmatpush1.bf16.msra.mxu0 0
    %108 = vmatprep.subr.bf16.mxu0 0
    %109 = vmatpush1.bf16.msra.mxu0 0
    %110 = vmatprep.subr.bf16.mxu0 %v89
    %111 = vmatpush1.bf16.msra.mxu0 %v88
    %112 = vmatprep.subr.bf16.mxu0 0
    %113 = vmatpush2.bf16.msra.mxu0 0
    %114 = vmatprep.subr.bf16.mxu0 0
    %115 = vmatpush2.bf16.msra.mxu0 0
    %116 = vmatprep.subr.bf16.mxu0 0
    %117 = vmatpush2.bf16.msra.mxu0 0
    %118 = vmatprep.subr.bf16.mxu0 0
    %119 = vmatpush2.bf16.msra.mxu0 0
    %120 = vmatprep.subr.bf16.mxu0 0
    %121 = vmatpush2.bf16.msra.mxu0 0
    %122 = vmatprep.subr.bf16.mxu0 0
    %123 = vmatpush2.bf16.msra.mxu0 0
    %124 = vmatprep.subr.bf16.mxu0 0
    %125 = vmatpush2.bf16.msra.mxu0 0
    %126 = vmatprep.subr.bf16.mxu0 0
    %127 = vmatpush2.bf16.msra.mxu0 0
    %128 = vmatprep.mubr.bf16.mxu0 0
    %129 = vmatmul.mubr.bf16.gmra.mxu0 %v94
    %v130 = vpop.f32.mrf.mxu0
    %v131 = vadd.f32 %v75, %v130
    %v132 = vpop.f32.mrf.mxu0
    %v133 = vadd.f32 %v79, %v132
    %v134 = vpop.f32.mrf.mxu0
    %v135 = vpop.f32.mrf.mxu0
    %136 = vdwg.mxu0
    %v137 = vmax.f32 %v131, 0.0
    %v138 = vmax.f32 %v133, 0.0
    %v139 = vld [vmem:[#allocation2] sm:$0xff]
    %v140 = vld [vmem:[#allocation2 + $0x8] sm:$0xff]
    %v141 = vpack.c.bf16 %v137, %v137
    %v142 = vpack.c.bf16 %v138, %v138
    %v143 = vld [vmem:[#allocation7] sm:$0xff]
    %v144 = vld [vmem:[#allocation7 + $0x8] sm:$0xff]
    %v145 = vld [vmem:[#allocation7 + $0x10] sm:$0xff]
    %v146 = vld [vmem:[#allocation7 + $0x18] sm:$0xff]
    %v147 = vld [vmem:[#allocation7 + $0x20] sm:$0xff]
    %v148 = vld [vmem:[#allocation7 + $0x28] sm:$0xff]
    %v149 = vld [vmem:[#allocation7 + $0x30] sm:$0xff]
    %v150 = vld [vmem:[#allocation7 + $0x38] sm:$0xff]
    %v151 = vld [vmem:[#allocation7 + $0x40] sm:$0xff]
    %v152 = vld [vmem:[#allocation7 + $0x48] sm:$0xff]
    %v153 = vld [vmem:[#allocation7 + $0x50] sm:$0xff]
    %v154 = vld [vmem:[#allocation7 + $0x58] sm:$0xff]
    %v155 = vld [vmem:[#allocation7 + $0x60] sm:$0xff]
    %v156 = vld [vmem:[#allocation7 + $0x68] sm:$0xff]
    %v157 = vld [vmem:[#allocation7 + $0x70] sm:$0xff]
    %v158 = vld [vmem:[#allocation7 + $0x78] sm:$0xff]
    %v159 = vld [vmem:[#allocation7 + $0x80] sm:$0xff]
    %v160 = vld [vmem:[#allocation7 + $0x88] sm:$0xff]
    %v161 = vld [vmem:[#allocation7 + $0x90] sm:$0xff]
    %v162 = vld [vmem:[#allocation7 + $0x98] sm:$0xff]
    %v163 = vld [vmem:[#allocation7 + $0xa0] sm:$0xff]
    %v164 = vld [vmem:[#allocation7 + $0xa8] sm:$0xff]
    %v165 = vld [vmem:[#allocation7 + $0xb0] sm:$0xff]
    %v166 = vld [vmem:[#allocation7 + $0xb8] sm:$0xff]
    %v167 = vld [vmem:[#allocation7 + $0xc0] sm:$0xff]
    %v168 = vld [vmem:[#allocation7 + $0xc8] sm:$0xff]
    %v169 = vld [vmem:[#allocation7 + $0xd0] sm:$0xff]
    %v170 = vld [vmem:[#allocation7 + $0xd8] sm:$0xff]
    %v171 = vld [vmem:[#allocation7 + $0xe0] sm:$0xff]
    %v172 = vld [vmem:[#allocation7 + $0xe8] sm:$0xff]
    %v173 = vld [vmem:[#allocation7 + $0xf0] sm:$0xff]
    %v174 = vld [vmem:[#allocation7 + $0xf8] sm:$0xff]
    %v207 = vunpack.c.l.b16 %v143
    %v208 = vunpack.c.h.b16 %v143
    %v209 = vunpack.c.l.b16 %v144
    %v210 = vunpack.c.h.b16 %v144
    %v211 = vunpack.c.l.b16 %v145
    %v212 = vunpack.c.h.b16 %v145
    %v213 = vunpack.c.l.b16 %v146
    %v214 = vunpack.c.h.b16 %v146
    %v215 = vunpack.c.l.b16 %v147
    %v216 = vunpack.c.h.b16 %v147
    %v217 = vunpack.c.l.b16 %v148
    %v218 = vunpack.c.h.b16 %v148
    %v219 = vunpack.c.l.b16 %v149
    %v220 = vunpack.c.h.b16 %v149
    %v221 = vunpack.c.l.b16 %v150
    %v222 = vunpack.c.h.b16 %v150
    %v223 = vunpack.c.l.b16 %v151
    %v224 = vunpack.c.h.b16 %v151
    %v225 = vunpack.c.l.b16 %v152
    %v226 = vunpack.c.h.b16 %v152
    %v227 = vunpack.c.l.b16 %v153
    %v228 = vunpack.c.h.b16 %v153
    %v229 = vunpack.c.l.b16 %v154
    %v230 = vunpack.c.h.b16 %v154
    %v231 = vunpack.c.l.b16 %v155
    %v232 = vunpack.c.h.b16 %v155
    %v233 = vunpack.c.l.b16 %v156
    %v234 = vunpack.c.h.b16 %v156
    %v235 = vunpack.c.l.b16 %v157
    %v236 = vunpack.c.h.b16 %v157
    %v237 = vunpack.c.l.b16 %v158
    %v238 = vunpack.c.h.b16 %v158
    %v239 = vunpack.c.l.b16 %v159
    %v240 = vunpack.c.h.b16 %v159
    %v241 = vunpack.c.l.b16 %v160
    %v242 = vunpack.c.h.b16 %v160
    %v243 = vunpack.c.l.b16 %v161
    %v244 = vunpack.c.h.b16 %v161
    %v245 = vunpack.c.l.b16 %v162
    %v246 = vunpack.c.h.b16 %v162
    %v247 = vunpack.c.l.b16 %v163
    %v248 = vunpack.c.h.b16 %v163
    %v249 = vunpack.c.l.b16 %v164
    %v250 = vunpack.c.h.b16 %v164
    %v251 = vunpack.c.l.b16 %v165
    %v252 = vunpack.c.h.b16 %v165
    %v253 = vunpack.c.l.b16 %v166
    %v254 = vunpack.c.h.b16 %v166
    %v255 = vunpack.c.l.b16 %v167
    %v256 = vunpack.c.h.b16 %v167
    %v257 = vunpack.c.l.b16 %v168
    %v258 = vunpack.c.h.b16 %v168
    %v259 = vunpack.c.l.b16 %v169
    %v260 = vunpack.c.h.b16 %v169
    %v261 = vunpack.c.l.b16 %v170
    %v262 = vunpack.c.h.b16 %v170
    %v263 = vunpack.c.l.b16 %v171
    %v264 = vunpack.c.h.b16 %v171
    %v265 = vunpack.c.l.b16 %v172
    %v266 = vunpack.c.h.b16 %v172
    %v267 = vunpack.c.l.b16 %v173
    %v268 = vunpack.c.h.b16 %v173
    %v269 = vunpack.c.l.b16 %v174
    %v270 = vunpack.c.h.b16 %v174
    %v271 = vpack.c.b16 %v209, %v207
    %v272 = vpack.c.b16 %v210, %v208
    %v273 = vpack.c.b16 %v213, %v211
    %v274 = vpack.c.b16 %v214, %v212
    %v275 = vpack.c.b16 %v217, %v215
    %v276 = vpack.c.b16 %v218, %v216
    %v277 = vpack.c.b16 %v221, %v219
    %v278 = vpack.c.b16 %v222, %v220
    %v279 = vpack.c.b16 %v225, %v223
    %v280 = vpack.c.b16 %v226, %v224
    %v281 = vpack.c.b16 %v229, %v227
    %v282 = vpack.c.b16 %v230, %v228
    %v283 = vpack.c.b16 %v233, %v231
    %v284 = vpack.c.b16 %v234, %v232
    %v285 = vpack.c.b16 %v237, %v235
    %v286 = vpack.c.b16 %v238, %v236
    %v287 = vpack.c.b16 %v241, %v239
    %v288 = vpack.c.b16 %v242, %v240
    %v289 = vpack.c.b16 %v245, %v243
    %v290 = vpack.c.b16 %v246, %v244
    %v291 = vpack.c.b16 %v249, %v247
    %v292 = vpack.c.b16 %v250, %v248
    %v293 = vpack.c.b16 %v253, %v251
    %v294 = vpack.c.b16 %v254, %v252
    %v295 = vpack.c.b16 %v257, %v255
    %v296 = vpack.c.b16 %v258, %v256
    %v297 = vpack.c.b16 %v261, %v259
    %v298 = vpack.c.b16 %v262, %v260
    %v299 = vpack.c.b16 %v265, %v263
    %v300 = vpack.c.b16 %v266, %v264
    %v301 = vpack.c.b16 %v269, %v267
    %v302 = vpack.c.b16 %v270, %v268
    %335 = vmatprep.subr.bf16.mxu0 %v286
    %336 = vmatpush1.bf16.msra.mxu0 %v285
    %337 = vmatprep.subr.bf16.mxu0 %v284
    %338 = vmatpush1.bf16.msra.mxu0 %v283
    %339 = vmatprep.subr.bf16.mxu0 %v282
    %340 = vmatpush1.bf16.msra.mxu0 %v281
    %341 = vmatprep.subr.bf16.mxu0 %v280
    %342 = vmatpush1.bf16.msra.mxu0 %v279
    %343 = vmatprep.subr.bf16.mxu0 %v278
    %344 = vmatpush1.bf16.msra.mxu0 %v277
    %345 = vmatprep.subr.bf16.mxu0 %v276
    %346 = vmatpush1.bf16.msra.mxu0 %v275
    %347 = vmatprep.subr.bf16.mxu0 %v274
    %348 = vmatpush1.bf16.msra.mxu0 %v273
    %349 = vmatprep.subr.bf16.mxu0 %v272
    %350 = vmatpush1.bf16.msra.mxu0 %v271
    %351 = vmatprep.subr.bf16.mxu0 %v302
    %352 = vmatpush2.bf16.msra.mxu0 %v301
    %353 = vmatprep.subr.bf16.mxu0 %v300
    %354 = vmatpush2.bf16.msra.mxu0 %v299
    %355 = vmatprep.subr.bf16.mxu0 %v298
    %356 = vmatpush2.bf16.msra.mxu0 %v297
    %357 = vmatprep.subr.bf16.mxu0 %v296
    %358 = vmatpush2.bf16.msra.mxu0 %v295
    %359 = vmatprep.subr.bf16.mxu0 %v294
    %360 = vmatpush2.bf16.msra.mxu0 %v293
    %361 = vmatprep.subr.bf16.mxu0 %v292
    %362 = vmatpush2.bf16.msra.mxu0 %v291
    %363 = vmatprep.subr.bf16.mxu0 %v290
    %364 = vmatpush2.bf16.msra.mxu0 %v289
    %365 = vmatprep.subr.bf16.mxu0 %v288
    %366 = vmatpush2.bf16.msra.mxu0 %v287
    %367 = vmatprep.mubr.bf16.mxu0 %v142
    %368 = vmatmul.mubr.bf16.gmra.mxu0 %v141
    %v369 = vpop.f32.mrf.mxu0
    %v370 = vadd.f32 0.0, %v369
    %v371 = vpop.f32.mrf.mxu0
    %v372 = vadd.f32 0.0, %v371
    %v373 = vpop.f32.mrf.mxu0
    %v374 = vpop.f32.mrf.mxu0
    %375 = vdwg.mxu0
    %v376 = vadd.f32 %v139, %v370
    %v377 = vadd.f32 %v140, %v372
    %378 = vst [vmem:[#allocation2] sm:$0xff] %v376
    %379 = vst [vmem:[#allocation2 + $0x8] sm:$0xff] %v377
    // Predicated region
    $region38: #{_mlp_forward_padded.1} parent=1 // pred_check
      %p380 = pneg %p60
    $region39: #{_mlp_forward_padded.1} parent=1 // pred_check_branch
      %382 = sbr.rel (%p380) target = $region41
    $region40: #{_mlp_forward_padded.1} parent=1 // pred_region
      %v383 = vld [vmem:[#allocation2] sm:$0xff]
      %v384 = vld [vmem:[#allocation2 + $0x8] sm:$0xff]
      %v385 = vld [vmem:[%s4] sm:$0x3]
      %v387 = vlaneseq
      %v388 = vshrl.u32 %v387, 7
      %v389 = vsub.s32 0, %v388
      %v390 = vrot.slane %v385, %v389
      %v391 = vlaneseq
      %v392 = vshrl.u32 %v391, 7
      %v393 = vsub.s32 1, %v392
      %v394 = vrot.slane %v385, %v393
      %v397 = vadd.f32 %v383, %v390
      %v398 = vadd.f32 %v384, %v394
      %399 = vst [vmem:[%s5] sm:$0xff] %v397
      %400 = vst [vmem:[%s5 + $0x8] sm:$0xff] %v398
    $region41: #{_mlp_forward_padded.1} parent=1 // pred_fallthru
      _
    // Predicated region
    $region42: #{_mlp_forward_padded.1} parent=1 // pred_check
      _
    $region43: #{_mlp_forward_padded.1} parent=1 // pred_check_branch
      %402 = sbr.rel (0) target = $region45
    $region44: #{_mlp_forward_padded.1} parent=1 // pred_region
      _
    $region45: #{_mlp_forward_padded.1} parent=1 // pred_fallthru
      _
    // Predicated region
    $region46: #{_mlp_forward_padded.1} parent=1 // pred_check
      _
    $region47: #{_mlp_forward_padded.1} parent=1 // pred_check_branch
      %404 = sbr.rel (0) target = $region49
    $region48: #{_mlp_forward_padded.1} parent=1 // pred_region
      _
    $region49: #{_mlp_forward_padded.1} parent=1 // pred_fallthru
      _
    %405 = vsyncpa [#allocation4], 1
    %406 = vsyncpa [#allocation6], 1

</llo_original>
